<compile_context>
chip_gen: v5e
topology: v5e:2x2
jax: 0.10.0
libtpu: 0.0.40
codegen_flags: <defaults>
</compile_context>

<pallas_src>
import functools

import jax
import jax.numpy as jnp
from jax.experimental import pallas as pl
from jax.experimental.pallas import tpu as pltpu


def _round_up(n, m):
    return ((n + m - 1) // m) * m


def _proj_skip_kernel(x_ref, wt_ref, b_ref, o_ref):
    """Fused: out = x @ Wt + b + x  for one (TILE_M, D) tile.

    wt_ref holds the *pre-transposed* PyTorch weight (in, out), so the matmul
    is a plain contraction with no in-kernel transpose.
    """
    x = x_ref[...]                                     # [TILE_M, D]
    y = jnp.dot(x, wt_ref[...],
                preferred_element_type=jnp.float32)    # MXU, f32 accumulate
    y = y + b_ref[...].astype(jnp.float32)             # broadcast [1, D]
    y = y + x.astype(jnp.float32)                      # residual in f32
    o_ref[...] = y.astype(o_ref.dtype)


@functools.partial(jax.jit, static_argnames=())
def clip_text_linear_skip_projector(x, weight, bias):
    """x: [..., D];  weight: [D, D] (torch (out,in));  bias: [D].

    Returns linear(x) + x with the same shape/dtype as x.
    """
    orig_shape = x.shape
    d = orig_shape[-1]
    x2 = x.reshape(-1, d)                              # [M, D]
    m = x2.shape[0]

    # --- lane-dense / sublane-aligned padding -------------------------------
    d_pad = _round_up(d, 128)                          # lane axis multiple of 128
    if m >= 512:
        tile_m = 512                                   # multiple of 256/128 (MXU)
    elif m >= 256:
        tile_m = 256
    else:
        tile_m = _round_up(m, 8)                       # tiny case: one tile
    m_pad = _round_up(m, tile_m)

    itemsize = jnp.dtype(x.dtype).itemsize
    if (m_pad, d_pad) != (m, d):
        x2 = jnp.pad(x2, ((0, m_pad - m), (0, d_pad - d)))
    # Pre-transpose weight once in the wrapper (torch (out,in) -> (in,out)).
    wt = weight.T
    if d_pad != d:
        wt = jnp.pad(wt, ((0, d_pad - d), (0, d_pad - d)))
        bias = jnp.pad(bias, (0, d_pad - d))
    b2 = bias.reshape(1, d_pad)

    grid_m = m_pad // tile_m

    # VMEM budget: double-buffered x & out tiles + resident weight/bias.
    tile_bytes = tile_m * d_pad * itemsize
    w_bytes = d_pad * d_pad * jnp.dtype(weight.dtype).itemsize
    vmem_bytes = 2 * 2 * tile_bytes + 2 * w_bytes + 4 * d_pad * itemsize
    vmem_limit = int(min(max(2 * vmem_bytes, 16 << 20), 48 << 20))

    out = pl.pallas_call(
        _proj_skip_kernel,
        out_shape=jax.ShapeDtypeStruct((m_pad, d_pad), x.dtype),
        grid_spec=pltpu.PrefetchScalarGridSpec(
            num_scalar_prefetch=0,
            grid=(grid_m,),
            in_specs=[
                pl.BlockSpec((tile_m, d_pad), lambda i: (i, 0)),  # x tile
                pl.BlockSpec((d_pad, d_pad), lambda i: (0, 0)),   # Wt (resident)
                pl.BlockSpec((1, d_pad), lambda i: (0, 0)),       # bias (resident)
            ],
            out_specs=pl.BlockSpec((tile_m, d_pad), lambda i: (i, 0)),
        ),
        compiler_params=pltpu.CompilerParams(
            dimension_semantics=("parallel",),
            vmem_limit_bytes=vmem_limit,
        ),
    )(x2, wt, b2)

    out = out[:m, :d]
    return out.reshape(orig_shape)


if __name__ == "__main__":
    # Small shapes consistent with the module: x = [batch, seq, dim]
    B, S, D = 2, 8, 32
    key = jax.random.PRNGKey(0)
    x = jax.random.normal(key, (B, S, D), dtype=jnp.float32)

    # Deterministic parameter init, exactly as the module's __init__:
    # weight and bias are zeroed -> forward reduces to identity (x + 0).
    weight = jnp.zeros((D, D), dtype=jnp.float32)      # torch Linear weight: (out, in)
    bias = jnp.zeros((D,), dtype=jnp.float32)

    out = clip_text_linear_skip_projector(x, weight, bias)
    out = jax.block_until_ready(out)

    ref = x @ weight.T + bias + x
    assert out.shape == x.shape
    assert out.dtype == x.dtype
    assert jnp.allclose(out, ref, atol=1e-5, rtol=1e-5)

    # Exercise the matmul path with non-trivial weights as well.
    k1, k2 = jax.random.split(key)
    w_rand = jax.random.normal(k1, (D, D), dtype=jnp.float32) * 0.02
    b_rand = jax.random.normal(k2, (D,), dtype=jnp.float32) * 0.02
    out2 = jax.block_until_ready(
        clip_text_linear_skip_projector(x, w_rand, b_rand))
    ref2 = x @ w_rand.T + b_rand + x
    assert jnp.allclose(out2, ref2, atol=1e-4, rtol=1e-4)

    # Larger shape to exercise the tiled (multi-step) grid path.
    Bb, Sb, Db = 16, 77, 256                           # M = 1232 -> padded/tiled
    xb = jax.random.normal(k1, (Bb, Sb, Db), dtype=jnp.float32)
    wb = jax.random.normal(k2, (Db, Db), dtype=jnp.float32) * 0.02
    bb = jax.random.normal(k1, (Db,), dtype=jnp.float32) * 0.02
    out3 = jax.block_until_ready(clip_text_linear_skip_projector(xb, wb, bb))
    ref3 = xb @ wb.T + bb + xb
    assert jnp.allclose(out3, ref3, atol=1e-3, rtol=1e-3)

    print("KERNEL_OK")
</pallas_src>

<mosaic_0001>
module attributes {stable_mosaic.version = 11 : i64} {
  func.func @_proj_skip_kernel(%arg0: i32, %arg1: memref<16x128xf32, #tpu.memory_space<vmem>>, %arg2: memref<128x128xf32, #tpu.memory_space<vmem>>, %arg3: memref<1x128xf32, #tpu.memory_space<vmem>>, %arg4: memref<16x128xf32, #tpu.memory_space<vmem>>) attributes {dimension_semantics = [#tpu.dimension_semantics<parallel>], iteration_bounds = array<i64: 1>, scalar_prefetch = 0 : i64, scratch_operands = 0 : i64, tpu.core_type = #tpu.core_type<tc>, window_params = [{transform_indices = @transform_0, window_bounds = array<i64: 16, 128>}, {pipeline_mode = #tpu.pipeline_mode<synchronous>, transform_indices = @transform_1, window_bounds = array<i64: 128, 128>}, {pipeline_mode = #tpu.pipeline_mode<synchronous>, transform_indices = @transform_2, window_bounds = array<i64: 1, 128>}, {transform_indices = @transform_3, window_bounds = array<i64: 16, 128>}]} {
    %c0 = arith.constant 0 : index
    %c0_0 = arith.constant 0 : index
    %0 = vector.load %arg1[%c0, %c0_0] : memref<16x128xf32, #tpu.memory_space<vmem>>, vector<16x128xf32>
    %c0_1 = arith.constant 0 : index
    %c0_2 = arith.constant 0 : index
    %1 = vector.load %arg2[%c0_1, %c0_2] : memref<128x128xf32, #tpu.memory_space<vmem>>, vector<128x128xf32>
    %cst = arith.constant dense<0.000000e+00> : vector<16x128xf32>
    %2 = tpu.matmul %0, %1, %cst {dimension_numbers = #tpu.dot_dimension_numbers<[1], [0], [0], [1], [0, 0, 1, 1], [], []>} : vector<16x128xf32>, vector<128x128xf32>, vector<16x128xf32> -> vector<16x128xf32>
    %c0_3 = arith.constant 0 : index
    %c0_4 = arith.constant 0 : index
    %3 = vector.load %arg3[%c0_3, %c0_4] : memref<1x128xf32, #tpu.memory_space<vmem>>, vector<1x128xf32>
    %4 = vector.broadcast %3 : vector<1x128xf32> to vector<16x128xf32>
    %5 = arith.addf %2, %4 : vector<16x128xf32>
    %6 = arith.addf %5, %0 : vector<16x128xf32>
    %c0_5 = arith.constant 0 : index
    %c0_6 = arith.constant 0 : index
    %7 = vector.load %arg4[%c0_5, %c0_6] : memref<16x128xf32, #tpu.memory_space<vmem>>, vector<16x128xf32>
    tpu.vector_store %arg4[%c0_5, %c0_6], %6 {strides = array<i32>} : memref<16x128xf32, #tpu.memory_space<vmem>>, vector<16x128xf32>,
    return
  }
  func.func @transform_0(%arg0: i32) -> (i32, i32) {
    %c0_i32 = arith.constant 0 : i32
    %c0_i32_0 = arith.constant 0 : i32
    return %arg0, %c0_i32 : i32, i32
  }
  func.func @transform_1(%arg0: i32) -> (i32, i32) {
    %c0_i32 = arith.constant 0 : i32
    %c0_i32_0 = arith.constant 0 : i32
    %c0_i32_1 = arith.constant 0 : i32
    return %c0_i32, %c0_i32_0 : i32, i32
  }
  func.func @transform_2(%arg0: i32) -> (i32, i32) {
    %c0_i32 = arith.constant 0 : i32
    %c0_i32_0 = arith.constant 0 : i32
    %c0_i32_1 = arith.constant 0 : i32
    return %c0_i32, %c0_i32_0 : i32, i32
  }
  func.func @transform_3(%arg0: i32) -> (i32, i32) {
    %c0_i32 = arith.constant 0 : i32
    %c0_i32_0 = arith.constant 0 : i32
    return %arg0, %c0_i32 : i32, i32
  }
}

</mosaic_0001>

<llo_original>
// kernel: clip_text_linear_skip_projector.1
$region0: #{clip_text_linear_skip_projector.1}
  #allocation0 [shape = 'u32[]', space=smem, size = 0x4, offset = 0x4, fixed_abs, tag = 'smem constant byte address 0x4 - core index']
  #allocation1 [shape = 'u32[72,128]{1,0:T(1,128)}', space=vmem, size = 0x9000, scoped, tag = 'internal scratch']
  %s0 = inlined_call_operand.vmem [shape: f32[16,128], index: 0, kind: input, shape index: {}]
  %s1 = inlined_call_operand.vmem [shape: f32[128,128], index: 1, kind: input, shape index: {}]
  %s2 = inlined_call_operand.vmem [shape: f32[1,128], index: 2, kind: input, shape index: {}]
  %s3 = inlined_call_operand.vmem [shape: f32[16,128], index: 3, kind: output, shape index: {}]
  %s4 = sld [smem:[#allocation0]]
  $region22: #{clip_text_linear_skip_projector.1} parent=0
    _
  %s6 = ssub.s32 1, %s4
  %s7 = scalar_select 0, %s6, %s4
  // Predicated region
  $region2: #{clip_text_linear_skip_projector.1} parent=0 // pred_check
    _
  $region3: #{clip_text_linear_skip_projector.1} parent=0 // pred_check_branch
    %9 = sbr.rel (0) target = $region5
  $region4: #{clip_text_linear_skip_projector.1} parent=0 // pred_region
    _
  $region5: #{clip_text_linear_skip_projector.1} parent=0 // pred_fallthru
    _
  // Predicated region
  $region6: #{clip_text_linear_skip_projector.1} parent=0 // pred_check
    _
  $region7: #{clip_text_linear_skip_projector.1} parent=0 // pred_check_branch
    %11 = sbr.rel (0) target = $region9
  $region8: #{clip_text_linear_skip_projector.1} parent=0 // pred_region
    _
  $region9: #{clip_text_linear_skip_projector.1} parent=0 // pred_fallthru
    _
  // Predicated region
  $region10: #{clip_text_linear_skip_projector.1} parent=0 // pred_check
    _
  $region11: #{clip_text_linear_skip_projector.1} parent=0 // pred_check_branch
    %13 = sbr.rel (0) target = $region13
  $region12: #{clip_text_linear_skip_projector.1} parent=0 // pred_region
    _
  $region13: #{clip_text_linear_skip_projector.1} parent=0 // pred_fallthru
    _
  %v14 = vld [vmem:[%s0] sm:$0xff]
  %v15 = vld [vmem:[%s0 + $0x8] sm:$0xff]
  %v16 = vld [vmem:[%s1] sm:$0xff]
  %v17 = vld [vmem:[%s1 + $0x8] sm:$0xff]
  %v18 = vld [vmem:[%s1 + $0x10] sm:$0xff]
  %v19 = vld [vmem:[%s1 + $0x18] sm:$0xff]
  %v20 = vld [vmem:[%s1 + $0x20] sm:$0xff]
  %v21 = vld [vmem:[%s1 + $0x28] sm:$0xff]
  %v22 = vld [vmem:[%s1 + $0x30] sm:$0xff]
  %v23 = vld [vmem:[%s1 + $0x38] sm:$0xff]
  %v24 = vld [vmem:[%s1 + $0x40] sm:$0xff]
  %v25 = vld [vmem:[%s1 + $0x48] sm:$0xff]
  %v26 = vld [vmem:[%s1 + $0x50] sm:$0xff]
  %v27 = vld [vmem:[%s1 + $0x58] sm:$0xff]
  %v28 = vld [vmem:[%s1 + $0x60] sm:$0xff]
  %v29 = vld [vmem:[%s1 + $0x68] sm:$0xff]
  %v30 = vld [vmem:[%s1 + $0x70] sm:$0xff]
  %v31 = vld [vmem:[%s1 + $0x78] sm:$0xff]
  %v32 = vld [vmem:[%s2] sm:$0x1]
  %v34 = vperm.slane %v32, 0
  %36 = vmatpush.msra.mxu0 %v31
  %37 = vmatpush.msra.mxu0 %v30
  %38 = vmatpush.msra.mxu0 %v29
  %39 = vmatpush.msra.mxu0 %v28
  %40 = vmatpush.msra.mxu0 %v27
  %41 = vmatpush.msra.mxu0 %v26
  %42 = vmatpush.msra.mxu0 %v25
  %43 = vmatpush.msra.mxu0 %v24
  %44 = vmatpush.msra.mxu0 %v23
  %45 = vmatpush.msra.mxu0 %v22
  %46 = vmatpush.msra.mxu0 %v21
  %47 = vmatpush.msra.mxu0 %v20
  %48 = vmatpush.msra.mxu0 %v19
  %49 = vmatpush.msra.mxu0 %v18
  %50 = vmatpush.msra.mxu0 %v17
  %51 = vmatpush.msra.mxu0 %v16
  %52 = vmatmul.f32.gmra.mxu0 %v14
  %v53 = vpop.f32.mrf.mxu0
  %v54 = vadd.f32 %v34, %v53
  %55 = vmatmul.f32.gmra.mxu0 %v15
  %v56 = vpop.f32.mrf.mxu0
  %v57 = vadd.f32 %v34, %v56
  %58 = vdwg.mxu0
  %v59 = vadd.f32 %v54, %v14
  %v60 = vadd.f32 %v57, %v15
  %61 = vst [vmem:[%s3] sm:$0xff] %v59
  %62 = vst [vmem:[%s3 + $0x8] sm:$0xff] %v60
  // Predicated region
  $region14: #{clip_text_linear_skip_projector.1} parent=0 // pred_check
    _
  $region15: #{clip_text_linear_skip_projector.1} parent=0 // pred_check_branch
    %64 = sbr.rel (0) target = $region17
  $region16: #{clip_text_linear_skip_projector.1} parent=0 // pred_region
    _
  $region17: #{clip_text_linear_skip_projector.1} parent=0 // pred_fallthru
    _
  // Predicated region
  $region18: #{clip_text_linear_skip_projector.1} parent=0 // pred_check
    _
  $region19: #{clip_text_linear_skip_projector.1} parent=0 // pred_check_branch
    %66 = sbr.rel (0) target = $region21
  $region20: #{clip_text_linear_skip_projector.1} parent=0 // pred_region
    _
  $region21: #{clip_text_linear_skip_projector.1} parent=0 // pred_fallthru
    _

</llo_original>
